<compile_context>
chip_gen: v7x
topology: tpu7x:2x2x1
jax: 0.10.0
libtpu: 0.0.40
codegen_flags: <defaults>
</compile_context>

<pallas_src>
import numpy as np
import jax
import jax.numpy as jnp
from jax.experimental import pallas as pl
from jax.experimental.pallas import tpu as pltpu


def _round_up(x, m):
    return (x + m - 1) // m * m


def _pick_images_per_block(n, cp, hw, bytes_cap=1 << 20):
    """Images per grid block: f32 block stays modest (VMEM-safe even on v7x's
    64 MiB), lane dim is a 128-multiple (or full extent), and at least two grid
    steps remain when n > 1 so both megacore TensorCores get work."""
    best = 1
    for nb in range(1, n + 1):
        if n % nb:
            continue
        if (nb * hw) % 128 != 0 and nb != n:
            continue
        if cp * nb * hw * 4 > bytes_cap:
            continue
        if n > 1 and n // nb < 2:
            continue
        best = nb
    return best


def basic_block_forward(x_nchw, w1_oihw, w2_oihw, bn1, bn2, eps=1e-5,
                        mm_dtype=jnp.bfloat16):
    """Fused BasicBlock forward (eval-mode BN) as a single Pallas kernel.

    x_nchw  : (N, C, H, W) float32 (PyTorch layout)
    w*_oihw : (C, C, 3, 3) conv weights (OIHW, bias=False)
    bn*     : dicts with 'gamma', 'beta', 'mean', 'var' of shape (C,)
    mm_dtype: dtype of the MXU operands (weights + im2col stack).  bf16 default
              for v5e/v6e/v7x MXU throughput; accumulation and all elementwise
              math stay f32.  Pass jnp.float32 for bit-tight verification.
    """
    N, Cin, H, W = x_nchw.shape
    Cout = w1_oihw.shape[0]
    assert w1_oihw.shape == (Cout, Cin, 3, 3)
    assert w2_oihw.shape == (Cout, Cout, 3, 3)
    assert Cin == Cout, "downsample=None requires inplanes == planes (stride=1)"
    HW = H * W
    Cp = _round_up(max(Cin, 8), 8)            # full sublane groups
    Nb = _pick_images_per_block(N, Cp, HW)    # images per grid block
    BLK = Nb * HW
    G = N // Nb

    # ---------------- wrapper-side prep (tiny, one-time) ----------------
    # (N, C, H, W) -> (Cp, N*HW): batch folded into the lane axis.
    x_cs = jnp.transpose(x_nchw.reshape(N, Cin, HW).astype(jnp.float32),
                         (1, 0, 2)).reshape(Cin, N * HW)
    if Cp != Cin:
        x_cs = jnp.pad(x_cs, ((0, Cp - Cin), (0, 0)))

    def fold_bn(p):
        s = (p["gamma"] / jnp.sqrt(p["var"] + eps)).astype(jnp.float32)
        b = (p["beta"] - p["mean"] * s).astype(jnp.float32)
        # padded bias rows stay exactly zero -> padded channels stay zero
        return s, jnp.pad(b, (0, Cp - Cout)).reshape(Cp, 1)

    s1, b1 = fold_bn(bn1)
    s2, b2 = fold_bn(bn2)

    def prep_w(w, s):
        # OIHW -> (9, O, I) tap-major, fold the BN scale into the output
        # channels, pad, then lay out as the (Cp, 9*Cp) im2col weight so that
        # column k*Cp + i corresponds to tap k (k = dy*3 + dx), in-channel i.
        w9 = jnp.transpose(w.astype(jnp.float32), (2, 3, 0, 1)).reshape(9, Cout, Cin)
        w9 = w9 * s.reshape(1, Cout, 1)
        w9 = jnp.pad(w9, ((0, 0), (0, Cp - Cout), (0, Cp - Cin)))
        return jnp.transpose(w9, (1, 0, 2)).reshape(Cp, 9 * Cp).astype(mm_dtype)

    w1s = prep_w(w1_oihw, s1)
    w2s = prep_w(w2_oihw, s2)

    # Per-tap validity masks over the flattened spatial axis, tiled over the Nb
    # images of one block.  These masks ARE the zero padding.
    rows = np.arange(HW) // W
    cols = np.arange(HW) % W
    offsets, m = [], []
    for dy in range(3):
        for dx in range(3):
            offsets.append((dy - 1) * W + (dx - 1))
            valid = ((rows + dy - 1 >= 0) & (rows + dy - 1 < H) &
                     (cols + dx - 1 >= 0) & (cols + dx - 1 < W))
            m.append(valid.astype(np.float32))
    masks = jnp.asarray(np.tile(np.stack(m, axis=0), (1, Nb)))     # (9, BLK)

    # ------------------------------ kernel ------------------------------
    def kernel(x_ref, w1_ref, w2_ref, m_ref, b1_ref, b2_ref, o_ref):
        x = x_ref[...]                                     # (Cp, BLK) f32
        mk = [m_ref[k:k + 1, :] for k in range(9)]         # sliced once, reused

        def im2col(inp):
            # 9 rolled + masked copies stacked along sublanes -> (9*Cp, BLK).
            # pltpu.roll is an XLU lane rotation; wrap-around across image /
            # block edges only lands on positions the mask zeroes.
            taps = []
            for k, off in enumerate(offsets):
                sh = inp if off == 0 else pltpu.roll(inp, shift=(-off) % BLK, axis=1)
                taps.append(sh * mk[k])
            return jnp.concatenate(taps, axis=0).astype(mm_dtype)

        # conv1 (BN1 scale folded into weights) -> bias -> relu
        h = jnp.dot(w1_ref[...], im2col(x), preferred_element_type=jnp.float32)
        h = jnp.maximum(h + b1_ref[...], 0.0)
        # conv2 (BN2 scale folded) -> bias -> residual add (identity) -> relu
        y = jnp.dot(w2_ref[...], im2col(h), preferred_element_type=jnp.float32)
        o_ref[...] = jnp.maximum(y + b2_ref[...] + x, 0.0).astype(o_ref.dtype)

    out_cs = pl.pallas_call(
        kernel,
        out_shape=jax.ShapeDtypeStruct((Cp, N * HW), jnp.float32),
        grid=(G,),
        in_specs=[
            pl.BlockSpec((Cp, BLK), lambda g: (0, g)),       # x, lane-batched
            pl.BlockSpec((Cp, 9 * Cp), lambda g: (0, 0)),    # conv1 im2col weight
            pl.BlockSpec((Cp, 9 * Cp), lambda g: (0, 0)),    # conv2 im2col weight
            pl.BlockSpec((9, BLK), lambda g: (0, 0)),        # tap masks
            pl.BlockSpec((Cp, 1), lambda g: (0, 0)),         # bn1 bias (folded)
            pl.BlockSpec((Cp, 1), lambda g: (0, 0)),         # bn2 bias (folded)
        ],
        out_specs=pl.BlockSpec((Cp, BLK), lambda g: (0, g)),
        compiler_params=pltpu.CompilerParams(
            dimension_semantics=("parallel",)),   # batch-chunk axis -> both TCs
    )(x_cs, w1s, w2s, masks, b1, b2)

    # (Cp, N*HW) -> NCHW, drop channel padding (no-op layout work at toy sizes).
    out = jnp.transpose(out_cs.reshape(Cp, N, HW), (1, 0, 2))[:, :Cout, :]
    return out.reshape(N, Cout, H, W)


def reference_forward(x_nchw, w1_oihw, w2_oihw, bn1, bn2, eps=1e-5):
    """Pure-JAX reference (NCHW, like PyTorch BasicBlock in eval mode)."""
    def conv(x, w):
        return jax.lax.conv_general_dilated(
            x, w, window_strides=(1, 1), padding=((1, 1), (1, 1)),
            dimension_numbers=("NCHW", "OIHW", "NCHW"))

    def bn(x, p):
        s = p["gamma"] / jnp.sqrt(p["var"] + eps)
        b = p["beta"] - p["mean"] * s
        return x * s[None, :, None, None] + b[None, :, None, None]

    out = jax.nn.relu(bn(conv(x_nchw, w1_oihw), bn1))
    out = bn(conv(out, w2_oihw), bn2)
    return jax.nn.relu(out + x_nchw)


if __name__ == "__main__":
    key = jax.random.PRNGKey(0)
    keys = jax.random.split(key, 12)

    N, C, H, W = 2, 4, 16, 16  # inplanes = planes = 4, stride = 1, no downsample
    x = jax.random.normal(keys[0], (N, C, H, W), jnp.float32)

    w1_oihw = 0.2 * jax.random.normal(keys[1], (C, C, 3, 3), jnp.float32)
    w2_oihw = 0.2 * jax.random.normal(keys[2], (C, C, 3, 3), jnp.float32)

    bn1 = dict(
        gamma=1.0 + 0.1 * jax.random.normal(keys[3], (C,), jnp.float32),
        beta=0.1 * jax.random.normal(keys[4], (C,), jnp.float32),
        mean=0.1 * jax.random.normal(keys[5], (C,), jnp.float32),
        var=0.5 + jnp.abs(jax.random.normal(keys[6], (C,), jnp.float32)),
    )
    bn2 = dict(
        gamma=1.0 + 0.1 * jax.random.normal(keys[7], (C,), jnp.float32),
        beta=0.1 * jax.random.normal(keys[8], (C,), jnp.float32),
        mean=0.1 * jax.random.normal(keys[9], (C,), jnp.float32),
        var=0.5 + jnp.abs(jax.random.normal(keys[10], (C,), jnp.float32)),
    )

    ref = jax.block_until_ready(reference_forward(x, w1_oihw, w2_oihw, bn1, bn2))

    # Strict verification path: f32 MXU operands.
    out_f32 = jax.block_until_ready(
        basic_block_forward(x, w1_oihw, w2_oihw, bn1, bn2, mm_dtype=jnp.float32))
    assert out_f32.shape == ref.shape == (N, C, H, W)
    np.testing.assert_allclose(np.asarray(out_f32), np.asarray(ref),
                               rtol=1e-4, atol=1e-4)

    # Fast path (default): bf16 MXU operands, f32 accumulation / elementwise.
    out_bf16 = jax.block_until_ready(
        basic_block_forward(x, w1_oihw, w2_oihw, bn1, bn2))
    np.testing.assert_allclose(np.asarray(out_bf16), np.asarray(ref),
                               rtol=5e-2, atol=1e-1)

    print("KERNEL_OK")
</pallas_src>

<mosaic_0001>
module attributes {stable_mosaic.version = 11 : i64} {
  func.func @kernel(%arg0: i32, %arg1: memref<8x256xf32, #tpu.memory_space<vmem>>, %arg2: memref<8x72xf32, #tpu.memory_space<vmem>>, %arg3: memref<8x72xf32, #tpu.memory_space<vmem>>, %arg4: memref<9x256xf32, #tpu.memory_space<vmem>>, %arg5: memref<8x1xf32, #tpu.memory_space<vmem>>, %arg6: memref<8x1xf32, #tpu.memory_space<vmem>>, %arg7: memref<8x256xf32, #tpu.memory_space<vmem>>) attributes {dimension_semantics = [#tpu.dimension_semantics<parallel>], iteration_bounds = array<i64: 2>, scalar_prefetch = 0 : i64, scratch_operands = 0 : i64, tpu.core_type = #tpu.core_type<tc>, window_params = [{transform_indices = @transform_0, window_bounds = array<i64: 8, 256>}, {pipeline_mode = #tpu.pipeline_mode<synchronous>, transform_indices = @transform_1, window_bounds = array<i64: 8, 72>}, {pipeline_mode = #tpu.pipeline_mode<synchronous>, transform_indices = @transform_2, window_bounds = array<i64: 8, 72>}, {pipeline_mode = #tpu.pipeline_mode<synchronous>, transform_indices = @transform_3, window_bounds = array<i64: 9, 256>}, {pipeline_mode = #tpu.pipeline_mode<synchronous>, transform_indices = @transform_4, window_bounds = array<i64: 8, 1>}, {pipeline_mode = #tpu.pipeline_mode<synchronous>, transform_indices = @transform_5, window_bounds = array<i64: 8, 1>}, {transform_indices = @transform_6, window_bounds = array<i64: 8, 256>}]} {
    %c0 = arith.constant 0 : index
    %c0_0 = arith.constant 0 : index
    %0 = vector.load %arg1[%c0, %c0_0] : memref<8x256xf32, #tpu.memory_space<vmem>>, vector<8x256xf32>
    %c0_1 = arith.constant 0 : index
    %c0_2 = arith.constant 0 : index
    %1 = vector.load %arg4[%c0_1, %c0_2] : memref<9x256xf32, #tpu.memory_space<vmem>>, vector<1x256xf32>
    %c1 = arith.constant 1 : index
    %c0_3 = arith.constant 0 : index
    %2 = vector.load %arg4[%c1, %c0_3] : memref<9x256xf32, #tpu.memory_space<vmem>>, vector<1x256xf32>
    %c2 = arith.constant 2 : index
    %c0_4 = arith.constant 0 : index
    %3 = vector.load %arg4[%c2, %c0_4] : memref<9x256xf32, #tpu.memory_space<vmem>>, vector<1x256xf32>
    %c3 = arith.constant 3 : index
    %c0_5 = arith.constant 0 : index
    %4 = vector.load %arg4[%c3, %c0_5] : memref<9x256xf32, #tpu.memory_space<vmem>>, vector<1x256xf32>
    %c4 = arith.constant 4 : index
    %c0_6 = arith.constant 0 : index
    %5 = vector.load %arg4[%c4, %c0_6] : memref<9x256xf32, #tpu.memory_space<vmem>>, vector<1x256xf32>
    %c5 = arith.constant 5 : index
    %c0_7 = arith.constant 0 : index
    %6 = vector.load %arg4[%c5, %c0_7] : memref<9x256xf32, #tpu.memory_space<vmem>>, vector<1x256xf32>
    %c6 = arith.constant 6 : index
    %c0_8 = arith.constant 0 : index
    %7 = vector.load %arg4[%c6, %c0_8] : memref<9x256xf32, #tpu.memory_space<vmem>>, vector<1x256xf32>
    %c7 = arith.constant 7 : index
    %c0_9 = arith.constant 0 : index
    %8 = vector.load %arg4[%c7, %c0_9] : memref<9x256xf32, #tpu.memory_space<vmem>>, vector<1x256xf32>
    %c8 = arith.constant 8 : index
    %c0_10 = arith.constant 0 : index
    %9 = vector.load %arg4[%c8, %c0_10] : memref<9x256xf32, #tpu.memory_space<vmem>>, vector<1x256xf32>
    %c0_11 = arith.constant 0 : index
    %c0_12 = arith.constant 0 : index
    %10 = vector.load %arg2[%c0_11, %c0_12] : memref<8x72xf32, #tpu.memory_space<vmem>>, vector<8x72xf32>
    %c17_i32 = arith.constant 17 : i32
    %11 = tpu.dynamic_rotate %0 by %c17_i32 dim 1 : vector<8x256xf32>, i32 -> vector<8x256xf32>
    %12 = vector.broadcast %1 : vector<1x256xf32> to vector<8x256xf32>
    %13 = arith.mulf %11, %12 : vector<8x256xf32>
    %c16_i32 = arith.constant 16 : i32
    %14 = tpu.dynamic_rotate %0 by %c16_i32 dim 1 : vector<8x256xf32>, i32 -> vector<8x256xf32>
    %15 = vector.broadcast %2 : vector<1x256xf32> to vector<8x256xf32>
    %16 = arith.mulf %14, %15 : vector<8x256xf32>
    %c15_i32 = arith.constant 15 : i32
    %17 = tpu.dynamic_rotate %0 by %c15_i32 dim 1 : vector<8x256xf32>, i32 -> vector<8x256xf32>
    %18 = vector.broadcast %3 : vector<1x256xf32> to vector<8x256xf32>
    %19 = arith.mulf %17, %18 : vector<8x256xf32>
    %c1_i32 = arith.constant 1 : i32
    %20 = tpu.dynamic_rotate %0 by %c1_i32 dim 1 : vector<8x256xf32>, i32 -> vector<8x256xf32>
    %21 = vector.broadcast %4 : vector<1x256xf32> to vector<8x256xf32>
    %22 = arith.mulf %20, %21 : vector<8x256xf32>
    %23 = vector.broadcast %5 : vector<1x256xf32> to vector<8x256xf32>
    %24 = arith.mulf %0, %23 : vector<8x256xf32>
    %c255_i32 = arith.constant 255 : i32
    %25 = tpu.dynamic_rotate %0 by %c255_i32 dim 1 : vector<8x256xf32>, i32 -> vector<8x256xf32>
    %26 = vector.broadcast %6 : vector<1x256xf32> to vector<8x256xf32>
    %27 = arith.mulf %25, %26 : vector<8x256xf32>
    %c241_i32 = arith.constant 241 : i32
    %28 = tpu.dynamic_rotate %0 by %c241_i32 dim 1 : vector<8x256xf32>, i32 -> vector<8x256xf32>
    %29 = vector.broadcast %7 : vector<1x256xf32> to vector<8x256xf32>
    %30 = arith.mulf %28, %29 : vector<8x256xf32>
    %c240_i32 = arith.constant 240 : i32
    %31 = tpu.dynamic_rotate %0 by %c240_i32 dim 1 : vector<8x256xf32>, i32 -> vector<8x256xf32>
    %32 = vector.broadcast %8 : vector<1x256xf32> to vector<8x256xf32>
    %33 = arith.mulf %31, %32 : vector<8x256xf32>
    %c239_i32 = arith.constant 239 : i32
    %34 = tpu.dynamic_rotate %0 by %c239_i32 dim 1 : vector<8x256xf32>, i32 -> vector<8x256xf32>
    %35 = vector.broadcast %9 : vector<1x256xf32> to vector<8x256xf32>
    %36 = arith.mulf %34, %35 : vector<8x256xf32>
    %37 = tpu.concatenate %13, %16, %19, %22, %24, %27, %30, %33, %36 in 0 : vector<8x256xf32>, vector<8x256xf32>, vector<8x256xf32>, vector<8x256xf32>, vector<8x256xf32>, vector<8x256xf32>, vector<8x256xf32>, vector<8x256xf32>, vector<8x256xf32> -> vector<72x256xf32>
    %cst = arith.constant dense<0.000000e+00> : vector<8x256xf32>
    %38 = tpu.matmul %10, %37, %cst {dimension_numbers = #tpu.dot_dimension_numbers<[1], [0], [0], [1], [0, 0, 1, 1], [], []>} : vector<8x72xf32>, vector<72x256xf32>, vector<8x256xf32> -> vector<8x256xf32>
    %c0_13 = arith.constant 0 : index
    %c0_14 = arith.constant 0 : index
    %39 = vector.load %arg5[%c0_13, %c0_14] : memref<8x1xf32, #tpu.memory_space<vmem>>, vector<8x1xf32>
    %40 = vector.broadcast %39 : vector<8x1xf32> to vector<8x256xf32>
    %41 = arith.addf %38, %40 : vector<8x256xf32>
    %cst_15 = arith.constant 0.000000e+00 : f32
    %42 = vector.broadcast %cst_15 : f32 to vector<8x256xf32>
    %43 = arith.maximumf %41, %42 : vector<8x256xf32>
    %c0_16 = arith.constant 0 : index
    %c0_17 = arith.constant 0 : index
    %44 = vector.load %arg3[%c0_16, %c0_17] : memref<8x72xf32, #tpu.memory_space<vmem>>, vector<8x72xf32>
    %c17_i32_18 = arith.constant 17 : i32
    %45 = tpu.dynamic_rotate %43 by %c17_i32_18 dim 1 : vector<8x256xf32>, i32 -> vector<8x256xf32>
    %46 = vector.broadcast %1 : vector<1x256xf32> to vector<8x256xf32>
    %47 = arith.mulf %45, %46 : vector<8x256xf32>
    %c16_i32_19 = arith.constant 16 : i32
    %48 = tpu.dynamic_rotate %43 by %c16_i32_19 dim 1 : vector<8x256xf32>, i32 -> vector<8x256xf32>
    %49 = vector.broadcast %2 : vector<1x256xf32> to vector<8x256xf32>
    %50 = arith.mulf %48, %49 : vector<8x256xf32>
    %c15_i32_20 = arith.constant 15 : i32
    %51 = tpu.dynamic_rotate %43 by %c15_i32_20 dim 1 : vector<8x256xf32>, i32 -> vector<8x256xf32>
    %52 = vector.broadcast %3 : vector<1x256xf32> to vector<8x256xf32>
    %53 = arith.mulf %51, %52 : vector<8x256xf32>
    %c1_i32_21 = arith.constant 1 : i32
    %54 = tpu.dynamic_rotate %43 by %c1_i32_21 dim 1 : vector<8x256xf32>, i32 -> vector<8x256xf32>
    %55 = vector.broadcast %4 : vector<1x256xf32> to vector<8x256xf32>
    %56 = arith.mulf %54, %55 : vector<8x256xf32>
    %57 = vector.broadcast %5 : vector<1x256xf32> to vector<8x256xf32>
    %58 = arith.mulf %43, %57 : vector<8x256xf32>
    %c255_i32_22 = arith.constant 255 : i32
    %59 = tpu.dynamic_rotate %43 by %c255_i32_22 dim 1 : vector<8x256xf32>, i32 -> vector<8x256xf32>
    %60 = vector.broadcast %6 : vector<1x256xf32> to vector<8x256xf32>
    %61 = arith.mulf %59, %60 : vector<8x256xf32>
    %c241_i32_23 = arith.constant 241 : i32
    %62 = tpu.dynamic_rotate %43 by %c241_i32_23 dim 1 : vector<8x256xf32>, i32 -> vector<8x256xf32>
    %63 = vector.broadcast %7 : vector<1x256xf32> to vector<8x256xf32>
    %64 = arith.mulf %62, %63 : vector<8x256xf32>
    %c240_i32_24 = arith.constant 240 : i32
    %65 = tpu.dynamic_rotate %43 by %c240_i32_24 dim 1 : vector<8x256xf32>, i32 -> vector<8x256xf32>
    %66 = vector.broadcast %8 : vector<1x256xf32> to vector<8x256xf32>
    %67 = arith.mulf %65, %66 : vector<8x256xf32>
    %c239_i32_25 = arith.constant 239 : i32
    %68 = tpu.dynamic_rotate %43 by %c239_i32_25 dim 1 : vector<8x256xf32>, i32 -> vector<8x256xf32>
    %69 = vector.broadcast %9 : vector<1x256xf32> to vector<8x256xf32>
    %70 = arith.mulf %68, %69 : vector<8x256xf32>
    %71 = tpu.concatenate %47, %50, %53, %56, %58, %61, %64, %67, %70 in 0 : vector<8x256xf32>, vector<8x256xf32>, vector<8x256xf32>, vector<8x256xf32>, vector<8x256xf32>, vector<8x256xf32>, vector<8x256xf32>, vector<8x256xf32>, vector<8x256xf32> -> vector<72x256xf32>
    %cst_26 = arith.constant dense<0.000000e+00> : vector<8x256xf32>
    %72 = tpu.matmul %44, %71, %cst_26 {dimension_numbers = #tpu.dot_dimension_numbers<[1], [0], [0], [1], [0, 0, 1, 1], [], []>} : vector<8x72xf32>, vector<72x256xf32>, vector<8x256xf32> -> vector<8x256xf32>
    %c0_27 = arith.constant 0 : index
    %c0_28 = arith.constant 0 : index
    %73 = vector.load %arg6[%c0_27, %c0_28] : memref<8x1xf32, #tpu.memory_space<vmem>>, vector<8x1xf32>
    %74 = vector.broadcast %73 : vector<8x1xf32> to vector<8x256xf32>
    %75 = arith.addf %72, %74 : vector<8x256xf32>
    %76 = arith.addf %75, %0 : vector<8x256xf32>
    %cst_29 = arith.constant 0.000000e+00 : f32
    %77 = vector.broadcast %cst_29 : f32 to vector<8x256xf32>
    %78 = arith.maximumf %76, %77 : vector<8x256xf32>
    %c0_30 = arith.constant 0 : index
    %c0_31 = arith.constant 0 : index
    %79 = vector.load %arg7[%c0_30, %c0_31] : memref<8x256xf32, #tpu.memory_space<vmem>>, vector<8x256xf32>
    tpu.vector_store %arg7[%c0_30, %c0_31], %78 {strides = array<i32>} : memref<8x256xf32, #tpu.memory_space<vmem>>, vector<8x256xf32>,
    return
  }
  func.func @transform_0(%arg0: i32) -> (i32, i32) {
    %c0_i32 = arith.constant 0 : i32
    %c0_i32_0 = arith.constant 0 : i32
    return %c0_i32, %arg0 : i32, i32
  }
  func.func @transform_1(%arg0: i32) -> (i32, i32) {
    %c0_i32 = arith.constant 0 : i32
    %c0_i32_0 = arith.constant 0 : i32
    %c0_i32_1 = arith.constant 0 : i32
    return %c0_i32, %c0_i32_0 : i32, i32
  }
  func.func @transform_2(%arg0: i32) -> (i32, i32) {
    %c0_i32 = arith.constant 0 : i32
    %c0_i32_0 = arith.constant 0 : i32
    %c0_i32_1 = arith.constant 0 : i32
    return %c0_i32, %c0_i32_0 : i32, i32
  }
  func.func @transform_3(%arg0: i32) -> (i32, i32) {
    %c0_i32 = arith.constant 0 : i32
    %c0_i32_0 = arith.constant 0 : i32
    %c0_i32_1 = arith.constant 0 : i32
    return %c0_i32, %c0_i32_0 : i32, i32
  }
  func.func @transform_4(%arg0: i32) -> (i32, i32) {
    %c0_i32 = arith.constant 0 : i32
    %c0_i32_0 = arith.constant 0 : i32
    %c0_i32_1 = arith.constant 0 : i32
    return %c0_i32, %c0_i32_0 : i32, i32
  }
  func.func @transform_5(%arg0: i32) -> (i32, i32) {
    %c0_i32 = arith.constant 0 : i32
    %c0_i32_0 = arith.constant 0 : i32
    %c0_i32_1 = arith.constant 0 : i32
    return %c0_i32, %c0_i32_0 : i32, i32
  }
  func.func @transform_6(%arg0: i32) -> (i32, i32) {
    %c0_i32 = arith.constant 0 : i32
    %c0_i32_0 = arith.constant 0 : i32
    return %c0_i32, %arg0 : i32, i32
  }
}

</mosaic_0001>

<llo_original>
// kernel: tpu_custom_call.1
$region0: #{tpu_custom_call.1}
  #allocation0 [shape = 'u32[]', space=smem, size = 0x4, offset = 0x4, fixed_abs, tag = 'smem constant byte address 0x4 - core index']
  #allocation1 [shape = 'u32[144,128]{1,0:T(1,128)}', space=vmem, size = 0x12000, scoped, tag = 'internal scratch']
  %s0 = inlined_call_operand.hbm [shape: f32[8,512], index: 0, kind: input, shape index: {}]
  %s1 = inlined_call_operand.vmem [shape: f32[8,72], index: 1, kind: input, shape index: {}]
  %s2 = inlined_call_operand.vmem [shape: f32[8,72], index: 2, kind: input, shape index: {}]
  %s3 = inlined_call_operand.hbm [shape: f32[9,256], index: 3, kind: input, shape index: {}]
  %s4 = inlined_call_operand.vmem [shape: f32[8,1], index: 4, kind: input, shape index: {}]
  %s5 = inlined_call_operand.vmem [shape: f32[8,1], index: 5, kind: input, shape index: {}]
  %s6 = inlined_call_operand.hbm [shape: f32[8,512], index: 6, kind: output, shape index: {}]
  %s7 = sld [smem:[#allocation0]]
  $region65: #{tpu_custom_call.1} parent=0
    _
  %s9 = ssub.s32 1, %s7
  %s10 = scalar_select 0, %s9, %s7
  $region1: #{tpu_custom_call.1} parent=0
    #allocation2 [shape = 'u8[16384]{0}', space=vmem, size = 0x4000, scoped, tag = 'input window, operand 0']
    #allocation3 [shape = 's32[2]{0}', space=sflag, size = 0x8, scoped, tag = 'scoped memory for tpu_custom_call.1']
    #allocation4 [shape = 's32[2]{0}', space=sflag, size = 0x8, scoped, tag = 'scoped memory for tpu_custom_call.1']
    #allocation5 [shape = 'u8[16384]{0}', space=vmem, size = 0x4000, scoped, tag = 'input window, operand 3, single buffered']
    #allocation6 [shape = 's32[1]{0}', space=sflag, size = 0x4, scoped, tag = 'scoped memory for tpu_custom_call.1']
    #allocation7 [shape = 'u8[16384]{0}', space=vmem, size = 0x4000, scoped, tag = 'output window, operand 0']
    %11 = vsyncpa [#allocation3], 0
    %s12 = scalar_lea.sflag [#allocation3], 1
    %13 = vsyncpa %s12, 0
    %14 = vsyncpa [#allocation6], 0
    %15 = vsyncpa [#allocation4], 0
    %s16 = scalar_lea.sflag [#allocation4], 1
    %17 = vsyncpa %s16, 0
    loop: start=0, step=1, limit=4
    $region2: #{tpu_custom_call.1} parent=1 // loop_pre_header
      _
    $region3: #{tpu_custom_call.1} parent=1 // loop_header
      %s19 = sphi 0, %s23
      %p20 = scmp.ge.s32.totalorder %s19, 4
      %s29 = sphi 0, %s31
      %s32 = sphi 0, %s29
      %s33 = sphi 0, %s32
      %s49 = sphi 0, %s33
      %s53 = sphi 0, %s53
      %s55 = sphi 0, %s53
      %s56 = sphi 0, %s55
      %s70 = sphi 0, %s56
      %s74 = sphi 0, %s74
      %s76 = sphi 0, %s74
      %s77 = sphi 0, %s76
      %s91 = sphi 0, %s77
      %s95 = sphi 0, %s95
      %s97 = sphi 0, %s95
      %s98 = sphi 0, %s97
      %s112 = sphi 0, %s98
      %s116 = sphi 0, %s116
      %s118 = sphi 0, %s116
      %s119 = sphi 0, %s118
      %s133 = sphi 0, %s119
      %s137 = sphi 0, %s137
      %s139 = sphi 0, %s137
      %s140 = sphi 0, %s139
      %s154 = sphi 0, %s140
      %s160 = sphi 0, %s162
      %s163 = sphi 0, %s160
      %s164 = sphi 0, %s163
      %s180 = sphi 0, %s164
    $region4: #{tpu_custom_call.1} parent=1 // loop_header_branch
      %22 = sbr.rel (%p20) target = $region8
    $region5: #{tpu_custom_call.1} parent=1 // loop_body
      %s24 = ssub.s32 %s19, 1
      %s25 = ssub.s32 %s19, 2
      %s26 = sadd.s32 %s19, 1
      %s27 = ssub.s32 %s19, %s26
      %p28 = scmp.eq.s32.totalorder %s27, 0
      %s30 = sadd.s32 %s29, 1
      %s31 = scalar_select %p28, %s29, %s30
      %p34 = pneg %p28
      %p35 = scmp.eq.s32.totalorder %s19, 1
      %p36 = por %p34, %p35
      %p37 = scmp.ne.s32.totalorder %s29, %s32
      %p38 = scmp.eq.s32.totalorder %s19, 0
      %p39 = por %p37, %p38
      %p40 = scmp.ne.s32.totalorder %s29, %s32
      %p41 = scmp.eq.s32.totalorder %s24, 1
      %p42 = por %p40, %p41
      %p43 = scmp.ne.s32.totalorder %s32, %s33
      %p44 = scmp.eq.s32.totalorder %s24, 0
      %p45 = por %p43, %p44
      %p46 = scmp.ne.s32.totalorder %s32, %s33
      %p47 = scmp.eq.s32.totalorder %s25, 1
      %p48 = por %p46, %p47
      %p50 = scmp.ne.s32.totalorder %s33, %s49
      %p51 = scmp.eq.s32.totalorder %s25, 0
      %p52 = por %p50, %p51
      %s54 = sadd.s32 %s53, 1
      %p57 = scmp.eq.s32.totalorder %s19, 1
      %p58 = scmp.ne.s32.totalorder %s53, %s55
      %p59 = scmp.eq.s32.totalorder %s19, 0
      %p60 = por %p58, %p59
      %p61 = scmp.ne.s32.totalorder %s53, %s55
      %p62 = scmp.eq.s32.totalorder %s24, 1
      %p63 = por %p61, %p62
      %p64 = scmp.ne.s32.totalorder %s55, %s56
      %p65 = scmp.eq.s32.totalorder %s24, 0
      %p66 = por %p64, %p65
      %p67 = scmp.ne.s32.totalorder %s55, %s56
      %p68 = scmp.eq.s32.totalorder %s25, 1
      %p69 = por %p67, %p68
      %p71 = scmp.ne.s32.totalorder %s56, %s70
      %p72 = scmp.eq.s32.totalorder %s25, 0
      %p73 = por %p71, %p72
      %s75 = sadd.s32 %s74, 1
      %p78 = scmp.eq.s32.totalorder %s19, 1
      %p79 = scmp.ne.s32.totalorder %s74, %s76
      %p80 = scmp.eq.s32.totalorder %s19, 0
      %p81 = por %p79, %p80
      %p82 = scmp.ne.s32.totalorder %s74, %s76
      %p83 = scmp.eq.s32.totalorder %s24, 1
      %p84 = por %p82, %p83
      %p85 = scmp.ne.s32.totalorder %s76, %s77
      %p86 = scmp.eq.s32.totalorder %s24, 0
      %p87 = por %p85, %p86
      %p88 = scmp.ne.s32.totalorder %s76, %s77
      %p89 = scmp.eq.s32.totalorder %s25, 1
      %p90 = por %p88, %p89
      %p92 = scmp.ne.s32.totalorder %s77, %s91
      %p93 = scmp.eq.s32.totalorder %s25, 0
      %p94 = por %p92, %p93
      %s96 = sadd.s32 %s95, 1
      %p99 = scmp.eq.s32.totalorder %s19, 1
      %p100 = scmp.ne.s32.totalorder %s95, %s97
      %p101 = scmp.eq.s32.totalorder %s19, 0
      %p102 = por %p100, %p101
      %p103 = scmp.ne.s32.totalorder %s95, %s97
      %p104 = scmp.eq.s32.totalorder %s24, 1
      %p105 = por %p103, %p104
      %p106 = scmp.ne.s32.totalorder %s97, %s98
      %p107 = scmp.eq.s32.totalorder %s24, 0
      %p108 = por %p106, %p107
      %p109 = scmp.ne.s32.totalorder %s97, %s98
      %p110 = scmp.eq.s32.totalorder %s25, 1
      %p111 = por %p109, %p110
      %p113 = scmp.ne.s32.totalorder %s98, %s112
      %p114 = scmp.eq.s32.totalorder %s25, 0
      %p115 = por %p113, %p114
      %s117 = sadd.s32 %s116, 1
      %p120 = scmp.eq.s32.totalorder %s19, 1
      %p121 = scmp.ne.s32.totalorder %s116, %s118
      %p122 = scmp.eq.s32.totalorder %s19, 0
      %p123 = por %p121, %p122
      %p124 = scmp.ne.s32.totalorder %s116, %s118
      %p125 = scmp.eq.s32.totalorder %s24, 1
      %p126 = por %p124, %p125
      %p127 = scmp.ne.s32.totalorder %s118, %s119
      %p128 = scmp.eq.s32.totalorder %s24, 0
      %p129 = por %p127, %p128
      %p130 = scmp.ne.s32.totalorder %s118, %s119
      %p131 = scmp.eq.s32.totalorder %s25, 1
      %p132 = por %p130, %p131
      %p134 = scmp.ne.s32.totalorder %s119, %s133
      %p135 = scmp.eq.s32.totalorder %s25, 0
      %p136 = por %p134, %p135
      %s138 = sadd.s32 %s137, 1
      %p141 = scmp.eq.s32.totalorder %s19, 1
      %p142 = scmp.ne.s32.totalorder %s137, %s139
      %p143 = scmp.eq.s32.totalorder %s19, 0
      %p144 = por %p142, %p143
      %p145 = scmp.ne.s32.totalorder %s137, %s139
      %p146 = scmp.eq.s32.totalorder %s24, 1
      %p147 = por %p145, %p146
      %p148 = scmp.ne.s32.totalorder %s139, %s140
      %p149 = scmp.eq.s32.totalorder %s24, 0
      %p150 = por %p148, %p149
      %p151 = scmp.ne.s32.totalorder %s139, %s140
      %p152 = scmp.eq.s32.totalorder %s25, 1
      %p153 = por %p151, %p152
      %p155 = scmp.ne.s32.totalorder %s140, %s154
      %p156 = scmp.eq.s32.totalorder %s25, 0
      %p157 = por %p155, %p156
      %s158 = ssub.s32 %s19, %s26
      %p159 = scmp.eq.s32.totalorder %s158, 0
      %s161 = sadd.s32 %s160, 1
      %s162 = scalar_select %p159, %s160, %s161
      %p165 = pneg %p159
      %p166 = scmp.eq.s32.totalorder %s19, 1
      %p167 = por %p165, %p166
      %p168 = scmp.ne.s32.totalorder %s160, %s163
      %p169 = scmp.eq.s32.totalorder %s19, 0
      %p170 = por %p168, %p169
      %p171 = scmp.ne.s32.totalorder %s160, %s163
      %p172 = scmp.eq.s32.totalorder %s24, 1
      %p173 = por %p171, %p172
      %p174 = scmp.ne.s32.totalorder %s163, %s164
      %p175 = scmp.eq.s32.totalorder %s24, 0
      %p176 = por %p174, %p175
      %p177 = scmp.ne.s32.totalorder %s163, %s164
      %p178 = scmp.eq.s32.totalorder %s25, 1
      %p179 = por %p177, %p178
      %p181 = scmp.ne.s32.totalorder %s164, %s180
      %p182 = scmp.eq.s32.totalorder %s25, 0
      %p183 = por %p181, %p182
      %p184 = scmp.le.s32.totalorder 1, %s19
      %p185 = scmp.lt.s32.totalorder %s19, 3
      %p186 = pnand %p184, %p185
      %p187 = pneg %p186
      // Predicated region
      $region9: #{tpu_custom_call.1} parent=5 // pred_check
        _
      $region10: #{tpu_custom_call.1} parent=5 // pred_check_branch
        %189 = sbr.rel (%p186) target = $region12
      $region11: #{tpu_custom_call.1} parent=5 // pred_region
        %s190 = ssub.s32 %s19, 1
        // Predicated region
        $region13: #{tpu_custom_call.1} parent=11 // pred_check
          %p191 = pneg %p66
        $region14: #{tpu_custom_call.1} parent=11 // pred_check_branch
          %193 = sbr.rel (%p191) target = $region16
        $region15: #{tpu_custom_call.1} parent=11 // pred_region
          _
        $region16: #{tpu_custom_call.1} parent=11 // pred_fallthru
          _
        // Predicated region
        $region17: #{tpu_custom_call.1} parent=11 // pred_check
          %p194 = pneg %p87
        $region18: #{tpu_custom_call.1} parent=11 // pred_check_branch
          %196 = sbr.rel (%p194) target = $region20
        $region19: #{tpu_custom_call.1} parent=11 // pred_region
          _
        $region20: #{tpu_custom_call.1} parent=11 // pred_fallthru
          _
        // Predicated region
        $region21: #{tpu_custom_call.1} parent=11 // pred_check
          %p197 = pneg %p108
        $region22: #{tpu_custom_call.1} parent=11 // pred_check_branch
          %199 = sbr.rel (%p197) target = $region24
        $region23: #{tpu_custom_call.1} parent=11 // pred_region
          %s201 = ssub.s32 512, 512
          %202 = vsyncadd [#allocation6], %s201
          %s203 = sshll.u32 [#allocation5], 4
          %s204 = int_to_ptr.vmem [resolvable:$true] %s203
          %209 = dma.hbm_to_vmem [thread:$0]  %s3, 512, %s204, [#allocation6], 256, 256, 16
        $region24: #{tpu_custom_call.1} parent=11 // pred_fallthru
          _
        // Predicated region
        $region25: #{tpu_custom_call.1} parent=11 // pred_check
          %p210 = pneg %p129
        $region26: #{tpu_custom_call.1} parent=11 // pred_check_branch
          %212 = sbr.rel (%p210) target = $region28
        $region27: #{tpu_custom_call.1} parent=11 // pred_region
          _
        $region28: #{tpu_custom_call.1} parent=11 // pred_fallthru
          _
        // Predicated region
        $region29: #{tpu_custom_call.1} parent=11 // pred_check
          %p213 = pneg %p150
        $region30: #{tpu_custom_call.1} parent=11 // pred_check_branch
          %215 = sbr.rel (%p213) target = $region32
        $region31: #{tpu_custom_call.1} parent=11 // pred_region
          _
        $region32: #{tpu_custom_call.1} parent=11 // pred_fallthru
          _
      $region12: #{tpu_custom_call.1} parent=5 // pred_fallthru
        _
      %p216 = scmp.lt.s32.totalorder %s19, 2
      // Predicated region
      $region33: #{tpu_custom_call.1} parent=5 // pred_check
        %p217 = pneg %p216
      $region34: #{tpu_custom_call.1} parent=5 // pred_check_branch
        %219 = sbr.rel (%p217) target = $region36
      $region35: #{tpu_custom_call.1} parent=5 // pred_region
        // Predicated region
        $region37: #{tpu_custom_call.1} parent=35 // pred_check
          %p220 = pneg %p39
        $region38: #{tpu_custom_call.1} parent=35 // pred_check_branch
          %222 = sbr.rel (%p220) target = $region40
        $region39: #{tpu_custom_call.1} parent=35 // pred_region
          %s223 = sand.u32 %s29, 1
          %s224 = scalar_lea.sflag [#allocation3], %s223
          %s225 = sand.u32 %s29, 1
          %s226 = smul.addr %s225, 16
          %s227 = scalar_lea.vmem [#allocation2], %s226
          %s228 = smul.u32 2, %s19
          %s230 = ssub.s32 256, 256
          %231 = vsyncadd %s224, %s230
          %s232 = smul.addr %s228, 128
          %s233 = scalar_lea.hbm %s0, %s232
          %s235 = sshll.u32 %s227, 4
          %s236 = int_to_ptr.vmem [resolvable:$true] %s235
          %238 = dma.hbm_to_vmem [thread:$0]  %s233, 256, %s236, %s224
        $region40: #{tpu_custom_call.1} parent=35 // pred_fallthru
          _
      $region36: #{tpu_custom_call.1} parent=5 // pred_fallthru
        _
      %p239 = scmp.le.s32.totalorder 1, %s19
      %p240 = scmp.lt.s32.totalorder %s19, 3
      %p241 = pnand %p239, %p240
      %p242 = pneg %p241
      // Predicated region
      $region41: #{tpu_custom_call.1} parent=5 // pred_check
        _
      $region42: #{tpu_custom_call.1} parent=5 // pred_check_branch
        %244 = sbr.rel (%p241) target = $region44
      $region43: #{tpu_custom_call.1} parent=5 // pred_region
        %s245 = ssub.s32 %s19, 1
        %s246 = sand.u32 %s32, 1
        %s247 = scalar_lea.sflag [#allocation3], %s246
        %s248 = sand.u32 %s32, 1
        %s249 = smul.addr %s248, 16
        %s250 = scalar_lea.vmem [#allocation2], %s249
        // Predicated region
        $region45: #{tpu_custom_call.1} parent=43 // pred_check
          %p251 = pneg %p45
        $region46: #{tpu_custom_call.1} parent=43 // pred_check_branch
          %253 = sbr.rel (%p251) target = $region48
        $region47: #{tpu_custom_call.1} parent=43 // pred_region
          %254 = dma.done %s247, 256
        $region48: #{tpu_custom_call.1} parent=43 // pred_fallthru
          _
        // Predicated region
        $region49: #{tpu_custom_call.1} parent=43 // pred_check
          %p255 = pneg %p108
        $region50: #{tpu_custom_call.1} parent=43 // pred_check_branch
          %257 = sbr.rel (%p255) target = $region52
        $region51: #{tpu_custom_call.1} parent=43 // pred_region
          %258 = dma.done [#allocation6], 512
        $region52: #{tpu_custom_call.1} parent=43 // pred_fallthru
          _
        %s259 = sand.u32 %s32, 1
        %s260 = scalar_lea.sflag [#allocation3], %s259
        %s261 = sand.u32 %s32, 1
        %s262 = smul.addr %s261, 16
        %s263 = scalar_lea.vmem [#allocation2], %s262
        %p264 = pneg %p45
        %p265 = pneg %p42
        %p266 = pneg %p66
        %p267 = pneg %p63
        %p268 = pneg %p87
        %p269 = pneg %p84
        %p270 = pneg %p108
        %p271 = pneg %p105
        %p272 = pneg %p129
        %p273 = pneg %p126
        %p274 = pneg %p150
        %p275 = pneg %p147
        %p276 = pneg %p176
        %p277 = pneg %p173
        %s278 = sand.u32 %s163, 1
        %s279 = scalar_lea.sflag [#allocation4], %s278
        %s280 = sand.u32 %s163, 1
        %s281 = smul.addr %s280, 16
        %s282 = scalar_lea.vmem [#allocation7], %s281
        %s283 = smul.u32 2, %s24
        %s284 = smul.u32 2, %s24
        %v285 = vld [vmem:[%s250] sm:$0xff]
        %v286 = vld [vmem:[%s250 + $0x8] sm:$0xff]
        %v287 = vld [vmem:[#allocation5] ss:$8 sm:$0x3]
        %s288 = scalar_lea.vmem [#allocation5], 1
        %v289 = vld [vmem:[%s288] ss:$8 sm:$0x3]
        %s290 = scalar_lea.vmem [#allocation5], 2
        %v291 = vld [vmem:[%s290] ss:$8 sm:$0x3]
        %s292 = scalar_lea.vmem [#allocation5], 3
        %v293 = vld [vmem:[%s292] ss:$8 sm:$0x3]
        %s294 = scalar_lea.vmem [#allocation5], 4
        %v295 = vld [vmem:[%s294] ss:$8 sm:$0x3]
        %s296 = scalar_lea.vmem [#allocation5], 5
        %v297 = vld [vmem:[%s296] ss:$8 sm:$0x3]
        %s298 = scalar_lea.vmem [#allocation5], 6
        %v299 = vld [vmem:[%s298] ss:$8 sm:$0x3]
        %s300 = scalar_lea.vmem [#allocation5], 7
        %v301 = vld [vmem:[%s300] ss:$8 sm:$0x3]
        %s302 = scalar_lea.vmem [#allocation5], 16
        %v303 = vld [vmem:[%s302] ss:$8 sm:$0x3]
        %v304 = vld [vmem:[%s1] sm:$0xff]
        %305 = vrot.lane.b32.xlu0 %v285, 17
        %v306 = vpop.permute.xlu0 %305
        %307 = vrot.lane.b32.xlu0 %v286, 17
        %v308 = vpop.permute.xlu0 %307
        %v309 = vlaneseq
        %v310 = vand.u32 %v309, 127
        %vm311 = vcmp.lt.s32.totalorder %v310, 17
        %v312 = vsel %vm311, %v306, %v308
        %v313 = vsel %vm311, %v308, %v306
        %v315 = vlaneseq
        %v316 = vshrl.u32 %v315, 7
        %v317 = vsub.s32 0, %v316
        %v318 = vrot.slane %v287, %v317
        %v319 = vlaneseq
        %v320 = vshrl.u32 %v319, 7
        %v321 = vsub.s32 1, %v320
        %v322 = vrot.slane %v287, %v321
        %v325 = vmul.f32 %v313, %v318
        %v326 = vmul.f32 %v312, %v322
        %327 = vrot.lane.b32.xlu0 %v285, 16
        %v328 = vpop.permute.xlu0 %327
        %329 = vrot.lane.b32.xlu0 %v286, 16
        %v330 = vpop.permute.xlu0 %329
        %vm331 = vcmp.lt.s32.totalorder %v310, 16
        %v332 = vsel %vm331, %v328, %v330
        %v333 = vsel %vm331, %v330, %v328
        %v335 = vlaneseq
        %v336 = vshrl.u32 %v335, 7
        %v337 = vsub.s32 0, %v336
        %v338 = vrot.slane %v289, %v337
        %v339 = vlaneseq
        %v340 = vshrl.u32 %v339, 7
        %v341 = vsub.s32 1, %v340
        %v342 = vrot.slane %v289, %v341
        %v345 = vmul.f32 %v333, %v338
        %v346 = vmul.f32 %v332, %v342
        %347 = vrot.lane.b32.xlu0 %v285, 15
        %v348 = vpop.permute.xlu0 %347
        %349 = vrot.lane.b32.xlu0 %v286, 15
        %v350 = vpop.permute.xlu0 %349
        %vm351 = vcmp.lt.s32.totalorder %v310, 15
        %v352 = vsel %vm351, %v348, %v350
        %v353 = vsel %vm351, %v350, %v348
        %v355 = vlaneseq
        %v356 = vshrl.u32 %v355, 7
        %v357 = vsub.s32 0, %v356
        %v358 = vrot.slane %v291, %v357
        %v359 = vlaneseq
        %v360 = vshrl.u32 %v359, 7
        %v361 = vsub.s32 1, %v360
        %v362 = vrot.slane %v291, %v361
        %v365 = vmul.f32 %v353, %v358
        %v366 = vmul.f32 %v352, %v362
        %367 = vrot.lane.b32.xlu0 %v285, 1
        %v368 = vpop.permute.xlu0 %367
        %369 = vrot.lane.b32.xlu0 %v286, 1
        %v370 = vpop.permute.xlu0 %369
        %vm371 = vcmp.lt.s32.totalorder %v310, 1
        %v372 = vsel %vm371, %v368, %v370
        %v373 = vsel %vm371, %v370, %v368
        %v375 = vlaneseq
        %v376 = vshrl.u32 %v375, 7
        %v377 = vsub.s32 0, %v376
        %v378 = vrot.slane %v293, %v377
        %v379 = vlaneseq
        %v380 = vshrl.u32 %v379, 7
        %v381 = vsub.s32 1, %v380
        %v382 = vrot.slane %v293, %v381
        %v385 = vmul.f32 %v373, %v378
        %v386 = vmul.f32 %v372, %v382
        %v388 = vlaneseq
        %v389 = vshrl.u32 %v388, 7
        %v390 = vsub.s32 0, %v389
        %v391 = vrot.slane %v295, %v390
        %v392 = vlaneseq
        %v393 = vshrl.u32 %v392, 7
        %v394 = vsub.s32 1, %v393
        %v395 = vrot.slane %v295, %v394
        %v398 = vmul.f32 %v285, %v391
        %v399 = vmul.f32 %v286, %v395
        %400 = vrot.lane.b32.xlu0 %v285, 127
        %v401 = vpop.permute.xlu0 %400
        %402 = vrot.lane.b32.xlu0 %v286, 127
        %v403 = vpop.permute.xlu0 %402
        %vm404 = vcmp.lt.s32.totalorder %v310, 127
        %v405 = vsel %vm404, %v401, %v403
        %v406 = vsel %vm404, %v403, %v401
        %v408 = vlaneseq
        %v409 = vshrl.u32 %v408, 7
        %v410 = vsub.s32 0, %v409
        %v411 = vrot.slane %v297, %v410
        %v412 = vlaneseq
        %v413 = vshrl.u32 %v412, 7
        %v414 = vsub.s32 1, %v413
        %v415 = vrot.slane %v297, %v414
        %v418 = vmul.f32 %v405, %v411
        %v419 = vmul.f32 %v406, %v415
        %420 = vrot.lane.b32.xlu0 %v285, 113
        %v421 = vpop.permute.xlu0 %420
        %422 = vrot.lane.b32.xlu0 %v286, 113
        %v423 = vpop.permute.xlu0 %422
        %vm424 = vcmp.lt.s32.totalorder %v310, 113
        %v425 = vsel %vm424, %v421, %v423
        %v426 = vsel %vm424, %v423, %v421
        %v428 = vlaneseq
        %v429 = vshrl.u32 %v428, 7
        %v430 = vsub.s32 0, %v429
        %v431 = vrot.slane %v299, %v430
        %v432 = vlaneseq
        %v433 = vshrl.u32 %v432, 7
        %v434 = vsub.s32 1, %v433
        %v435 = vrot.slane %v299, %v434
        %v438 = vmul.f32 %v425, %v431
        %v439 = vmul.f32 %v426, %v435
        %440 = vrot.lane.b32.xlu0 %v285, 112
        %v441 = vpop.permute.xlu0 %440
        %442 = vrot.lane.b32.xlu0 %v286, 112
        %v443 = vpop.permute.xlu0 %442
        %vm444 = vcmp.lt.s32.totalorder %v310, 112
        %v445 = vsel %vm444, %v441, %v443
        %v446 = vsel %vm444, %v443, %v441
        %v448 = vlaneseq
        %v449 = vshrl.u32 %v448, 7
        %v450 = vsub.s32 0, %v449
        %v451 = vrot.slane %v301, %v450
        %v452 = vlaneseq
        %v453 = vshrl.u32 %v452, 7
        %v454 = vsub.s32 1, %v453
        %v455 = vrot.slane %v301, %v454
        %v458 = vmul.f32 %v445, %v451
        %v459 = vmul.f32 %v446, %v455
        %460 = vrot.lane.b32.xlu0 %v285, 111
        %v461 = vpop.permute.xlu0 %460
        %462 = vrot.lane.b32.xlu0 %v286, 111
        %v463 = vpop.permute.xlu0 %462
        %vm464 = vcmp.lt.s32.totalorder %v310, 111
        %v465 = vsel %vm464, %v461, %v463
        %v466 = vsel %vm464, %v463, %v461
        %v468 = vlaneseq
        %v469 = vshrl.u32 %v468, 7
        %v470 = vsub.s32 0, %v469
        %v471 = vrot.slane %v303, %v470
        %v472 = vlaneseq
        %v473 = vshrl.u32 %v472, 7
        %v474 = vsub.s32 1, %v473
        %v475 = vrot.slane %v303, %v474
        %v478 = vmul.f32 %v465, %v471
        %v479 = vmul.f32 %v466, %v475
        %v480 = vld [vmem:[%s4] sm:$0xff]
        %482 = vset.pattern.permute.xlu0 0
        %483 = vperm.xlu0 %482, %v480
        %v484 = vpop.permute.xlu0 %483
        %vm486 = vcmask 588800
        %v488 = vsel %vm486, %v304, 0
        %490 = vmatprep.subr.mxu0 %v326
        %491 = vmatpush1.msra.mxu0 %v325
        %492 = vmatprep.subr.mxu0 %v346
        %493 = vmatpush1.msra.mxu0 %v345
        %494 = vmatprep.subr.mxu0 %v366
        %495 = vmatpush1.msra.mxu0 %v365
        %496 = vmatprep.subr.mxu0 %v386
        %497 = vmatpush1.msra.mxu0 %v385
        %498 = vmatprep.subr.mxu0 %v399
        %499 = vmatpush1.msra.mxu0 %v398
        %500 = vmatprep.subr.mxu0 %v419
        %501 = vmatpush1.msra.mxu0 %v418
        %502 = vmatprep.subr.mxu0 %v439
        %503 = vmatpush1.msra.mxu0 %v438
        %504 = vmatprep.subr.mxu0 %v459
        %505 = vmatpush1.msra.mxu0 %v458
        %506 = vmatprep.subr.mxu0 %v479
        %507 = vmatpush1.msra.mxu0 %v478
        %508 = vmatprep.subr.mxu0 0.0
        %509 = vmatpush1.msra.mxu0 0.0
        %510 = vmatprep.subr.mxu0 0.0
        %511 = vmatpush1.msra.mxu0 0.0
        %512 = vmatprep.subr.mxu0 0.0
        %513 = vmatpush1.msra.mxu0 0.0
        %514 = vmatprep.subr.mxu0 0.0
        %515 = vmatpush1.msra.mxu0 0.0
        %516 = vmatprep.subr.mxu0 0.0
        %517 = vmatpush1.msra.mxu0 0.0
        %518 = vmatprep.subr.mxu0 0.0
        %519 = vmatpush1.msra.mxu0 0.0
        %520 = vmatprep.subr.mxu0 0.0
        %521 = vmatpush1.msra.mxu0 0.0
        %522 = vmatprep.subr.mxu0 0.0
        %523 = vmatpush1.msra.mxu0 0.0
        %524 = vmatprep.subr.mxu0 0.0
        %525 = vmatpush1.msra.mxu0 0.0
        %526 = vmatprep.subr.mxu0 0.0
        %527 = vmatpush1.msra.mxu0 0.0
        %528 = vmatprep.subr.mxu0 0.0
        %529 = vmatpush1.msra.mxu0 0.0
        %530 = vmatprep.subr.mxu0 0.0
        %531 = vmatpush1.msra.mxu0 0.0
        %532 = vmatprep.subr.mxu0 0.0
        %533 = vmatpush1.msra.mxu0 0.0
        %534 = vmatprep.subr.mxu0 0.0
        %535 = vmatpush1.msra.mxu0 0.0
        %536 = vmatprep.subr.mxu0 0.0
        %537 = vmatpush1.msra.mxu0 0.0
        %538 = vmatprep.subr.mxu0 0.0
        %539 = vmatpush1.msra.mxu0 0.0
        %540 = vmatprep.subr.mxu0 0.0
        %541 = vmatpush1.msra.mxu0 0.0
        %542 = vmatprep.subr.mxu0 0.0
        %543 = vmatpush1.msra.mxu0 0.0
        %544 = vmatprep.subr.mxu0 0.0
        %545 = vmatpush1.msra.mxu0 0.0
        %546 = vmatprep.subr.mxu0 0.0
        %547 = vmatpush1.msra.mxu0 0.0
        %548 = vmatprep.subr.mxu0 0.0
        %549 = vmatpush1.msra.mxu0 0.0
        %550 = vmatprep.subr.mxu0 0.0
        %551 = vmatpush1.msra.mxu0 0.0
        %552 = vmatprep.subr.mxu0 0.0
        %553 = vmatpush1.msra.mxu0 0.0
        %554 = vmatprep.mubr.f32.mxu0 0.0
        %555 = vmatmul.mubr.f32.gmra.mrb[0].mxu0 %v488
        %v556 = vpop.f32.mrb[0].mxu0
        %v557 = vadd.f32 %v484, %v556
        %v558 = vpop.f32.mrb[0].mxu0
        %v559 = vadd.f32 %v484, %v558
        %560 = vdwg.mxu0
        %v561 = vmax.f32 %v557, 0.0
        %v562 = vmax.f32 %v559, 0.0
        %v563 = vld [vmem:[%s2] sm:$0xff]
        %564 = vrot.lane.b32.xlu0 %v561, 17
        %v565 = vpop.permute.xlu0 %564
        %566 = vrot.lane.b32.xlu0 %v562, 17
        %v567 = vpop.permute.xlu0 %566
        %v568 = vsel %vm311, %v565, %v567
        %v569 = vsel %vm311, %v567, %v565
        %v570 = vmul.f32 %v569, %v318
        %v571 = vmul.f32 %v568, %v322
        %572 = vrot.lane.b32.xlu0 %v561, 16
        %v573 = vpop.permute.xlu0 %572
        %574 = vrot.lane.b32.xlu0 %v562, 16
        %v575 = vpop.permute.xlu0 %574
        %v576 = vsel %vm331, %v573, %v575
        %v577 = vsel %vm331, %v575, %v573
        %v578 = vmul.f32 %v577, %v338
        %v579 = vmul.f32 %v576, %v342
        %580 = vrot.lane.b32.xlu0 %v561, 15
        %v581 = vpop.permute.xlu0 %580
        %582 = vrot.lane.b32.xlu0 %v562, 15
        %v583 = vpop.permute.xlu0 %582
        %v584 = vsel %vm351, %v581, %v583
        %v585 = vsel %vm351, %v583, %v581
        %v586 = vmul.f32 %v585, %v358
        %v587 = vmul.f32 %v584, %v362
        %588 = vrot.lane.b32.xlu0 %v561, 1
        %v589 = vpop.permute.xlu0 %588
        %590 = vrot.lane.b32.xlu0 %v562, 1
        %v591 = vpop.permute.xlu0 %590
        %v592 = vsel %vm371, %v589, %v591
        %v593 = vsel %vm371, %v591, %v589
        %v594 = vmul.f32 %v593, %v378
        %v595 = vmul.f32 %v592, %v382
        %v596 = vmul.f32 %v561, %v391
        %v597 = vmul.f32 %v562, %v395
        %598 = vrot.lane.b32.xlu0 %v561, 127
        %v599 = vpop.permute.xlu0 %598
        %600 = vrot.lane.b32.xlu0 %v562, 127
        %v601 = vpop.permute.xlu0 %600
        %v602 = vsel %vm404, %v599, %v601
        %v603 = vsel %vm404, %v601, %v599
        %v604 = vmul.f32 %v602, %v411
        %v605 = vmul.f32 %v603, %v415
        %606 = vrot.lane.b32.xlu0 %v561, 113
        %v607 = vpop.permute.xlu0 %606
        %608 = vrot.lane.b32.xlu0 %v562, 113
        %v609 = vpop.permute.xlu0 %608
        %v610 = vsel %vm424, %v607, %v609
        %v611 = vsel %vm424, %v609, %v607
        %v612 = vmul.f32 %v610, %v431
        %v613 = vmul.f32 %v611, %v435
        %614 = vrot.lane.b32.xlu0 %v561, 112
        %v615 = vpop.permute.xlu0 %614
        %616 = vrot.lane.b32.xlu0 %v562, 112
        %v617 = vpop.permute.xlu0 %616
        %v618 = vsel %vm444, %v615, %v617
        %v619 = vsel %vm444, %v617, %v615
        %v620 = vmul.f32 %v618, %v451
        %v621 = vmul.f32 %v619, %v455
        %622 = vrot.lane.b32.xlu0 %v561, 111
        %v623 = vpop.permute.xlu0 %622
        %624 = vrot.lane.b32.xlu0 %v562, 111
        %v625 = vpop.permute.xlu0 %624
        %v626 = vsel %vm464, %v623, %v625
        %v627 = vsel %vm464, %v625, %v623
        %v628 = vmul.f32 %v626, %v471
        %v629 = vmul.f32 %v627, %v475
        %v630 = vld [vmem:[%s5] sm:$0xff]
        %632 = vset.pattern.permute.xlu0 0
        %633 = vperm.xlu0 %632, %v630
        %v634 = vpop.permute.xlu0 %633
        %v637 = vsel %vm486, %v563, 0
        %639 = vmatprep.subr.mxu0 %v571
        %640 = vmatpush1.msra.mxu0 %v570
        %641 = vmatprep.subr.mxu0 %v579
        %642 = vmatpush1.msra.mxu0 %v578
        %643 = vmatprep.subr.mxu0 %v587
        %644 = vmatpush1.msra.mxu0 %v586
        %645 = vmatprep.subr.mxu0 %v595
        %646 = vmatpush1.msra.mxu0 %v594
        %647 = vmatprep.subr.mxu0 %v597
        %648 = vmatpush1.msra.mxu0 %v596
        %649 = vmatprep.subr.mxu0 %v605
        %650 = vmatpush1.msra.mxu0 %v604
        %651 = vmatprep.subr.mxu0 %v613
        %652 = vmatpush1.msra.mxu0 %v612
        %653 = vmatprep.subr.mxu0 %v621
        %654 = vmatpush1.msra.mxu0 %v620
        %655 = vmatprep.subr.mxu0 %v629
        %656 = vmatpush1.msra.mxu0 %v628
        %657 = vmatprep.subr.mxu0 0.0
        %658 = vmatpush1.msra.mxu0 0.0
        %659 = vmatprep.subr.mxu0 0.0
        %660 = vmatpush1.msra.mxu0 0.0
        %661 = vmatprep.subr.mxu0 0.0
        %662 = vmatpush1.msra.mxu0 0.0
        %663 = vmatprep.subr.mxu0 0.0
        %664 = vmatpush1.msra.mxu0 0.0
        %665 = vmatprep.subr.mxu0 0.0
        %666 = vmatpush1.msra.mxu0 0.0
        %667 = vmatprep.subr.mxu0 0.0
        %668 = vmatpush1.msra.mxu0 0.0
        %669 = vmatprep.subr.mxu0 0.0
        %670 = vmatpush1.msra.mxu0 0.0
        %671 = vmatprep.subr.mxu0 0.0
        %672 = vmatpush1.msra.mxu0 0.0
        %673 = vmatprep.subr.mxu0 0.0
        %674 = vmatpush1.msra.mxu0 0.0
        %675 = vmatprep.subr.mxu0 0.0
        %676 = vmatpush1.msra.mxu0 0.0
        %677 = vmatprep.subr.mxu0 0.0
        %678 = vmatpush1.msra.mxu0 0.0
        %679 = vmatprep.subr.mxu0 0.0
        %680 = vmatpush1.msra.mxu0 0.0
        %681 = vmatprep.subr.mxu0 0.0
        %682 = vmatpush1.msra.mxu0 0.0
        %683 = vmatprep.subr.mxu0 0.0
        %684 = vmatpush1.msra.mxu0 0.0
        %685 = vmatprep.subr.mxu0 0.0
        %686 = vmatpush1.msra.mxu0 0.0
        %687 = vmatprep.subr.mxu0 0.0
        %688 = vmatpush1.msra.mxu0 0.0
        %689 = vmatprep.subr.mxu0 0.0
        %690 = vmatpush1.msra.mxu0 0.0
        %691 = vmatprep.subr.mxu0 0.0
        %692 = vmatpush1.msra.mxu0 0.0
        %693 = vmatprep.subr.mxu0 0.0
        %694 = vmatpush1.msra.mxu0 0.0
        %695 = vmatprep.subr.mxu0 0.0
        %696 = vmatpush1.msra.mxu0 0.0
        %697 = vmatprep.subr.mxu0 0.0
        %698 = vmatpush1.msra.mxu0 0.0
        %699 = vmatprep.subr.mxu0 0.0
        %700 = vmatpush1.msra.mxu0 0.0
        %701 = vmatprep.subr.mxu0 0.0
        %702 = vmatpush1.msra.mxu0 0.0
        %703 = vmatprep.mubr.f32.mxu0 0.0
        %704 = vmatmul.mubr.f32.gmra.mrb[0].mxu0 %v637
        %v705 = vpop.f32.mrb[0].mxu0
        %v706 = vadd.f32 %v634, %v705
        %v707 = vpop.f32.mrb[0].mxu0
        %v708 = vadd.f32 %v634, %v707
        %709 = vdwg.mxu0
        %v710 = vadd.f32 %v706, %v285
        %v711 = vadd.f32 %v708, %v286
        %v712 = vmax.f32 %v710, 0.0
        %v713 = vmax.f32 %v711, 0.0
        %714 = vst [vmem:[%s282] sm:$0xff] %v712
        %715 = vst [vmem:[%s282 + $0x8] sm:$0xff] %v713
        %s716 = sand.u32 %s163, 1
        %s717 = scalar_lea.sflag [#allocation4], %s716
        %s718 = sand.u32 %s163, 1
        %s719 = smul.addr %s718, 16
        %s720 = scalar_lea.vmem [#allocation7], %s719
        // Predicated region
        $region53: #{tpu_custom_call.1} parent=43 // pred_check
          %p721 = pneg %p173
        $region54: #{tpu_custom_call.1} parent=43 // pred_check_branch
          %723 = sbr.rel (%p721) target = $region56
        $region55: #{tpu_custom_call.1} parent=43 // pred_region
          %s724 = smul.u32 2, %s24
          %s726 = ssub.s32 256, 256
          %727 = vsyncadd %s717, %s726
          %s728 = smul.addr %s724, 128
          %s729 = scalar_lea.hbm %s6, %s728
          %s731 = sshll.u32 %s720, 4
          %s732 = int_to_ptr.vmem [resolvable:$true] %s731
          %734 = dma.vmem_to_hbm [thread:$0]  %s732, 256, %s729, %s717
        $region56: #{tpu_custom_call.1} parent=43 // pred_fallthru
          _
      $region44: #{tpu_custom_call.1} parent=5 // pred_fallthru
        _
      %p735 = scmp.le.s32.totalorder 2, %s19
      // Predicated region
      $region57: #{tpu_custom_call.1} parent=5 // pred_check
        %p736 = pneg %p735
      $region58: #{tpu_custom_call.1} parent=5 // pred_check_branch
        %738 = sbr.rel (%p736) target = $region60
      $region59: #{tpu_custom_call.1} parent=5 // pred_region
        %s739 = ssub.s32 %s19, 2
        // Predicated region
        $region61: #{tpu_custom_call.1} parent=59 // pred_check
          %p740 = pneg %p179
        $region62: #{tpu_custom_call.1} parent=59 // pred_check_branch
          %742 = sbr.rel (%p740) target = $region64
        $region63: #{tpu_custom_call.1} parent=59 // pred_region
          %s743 = sand.u32 %s164, 1
          %s744 = scalar_lea.sflag [#allocation4], %s743
          %s745 = sand.u32 %s164, 1
          %s746 = smul.addr %s745, 16
          %s747 = scalar_lea.vmem [#allocation7], %s746
          %748 = dma.done %s744, 256
        $region64: #{tpu_custom_call.1} parent=59 // pred_fallthru
          _
      $region60: #{tpu_custom_call.1} parent=5 // pred_fallthru
        _
    $region6: #{tpu_custom_call.1} parent=1 // loop_footer
      %s23 = sadd.s32 1, %s19
    $region7: #{tpu_custom_call.1} parent=1 // loop_footer_branch
      %18 = sbr.rel target = $region3
    $region8: #{tpu_custom_call.1} parent=1 // loop_exit
      _
    %749 = vsyncpa [#allocation3], 1
    %s750 = scalar_lea.sflag [#allocation3], 1
    %751 = vsyncpa %s750, 1
    %752 = vsyncpa [#allocation6], 1
    %753 = vsyncpa [#allocation4], 1
    %s754 = scalar_lea.sflag [#allocation4], 1
    %755 = vsyncpa %s754, 1

</llo_original>
